<compile_context>
chip_gen: v7x
topology: tpu7x:2x2x1
jax: 0.10.0
libtpu: 0.0.40
codegen_flags: <defaults>
</compile_context>

<pallas_src>
import math
import functools

import jax
import jax.numpy as jnp
from jax.experimental import pallas as pl
from jax.experimental.pallas import tpu as pltpu

_LANE = 128
_SUBLANE = 8
_MIB = 1024 * 1024


# --------------------------- PE table (the registered buffer) ---------------------------

def make_sinusoid_table(max_len, dim, dtype=jnp.float32):
    """Same table as the PyTorch buffer `pe` (without the leading batch dim): [max_len, dim]."""
    position = jnp.arange(max_len, dtype=jnp.float32)[:, None]                       # [max_len, 1]
    div_term = jnp.exp(jnp.arange(0, dim, 2, dtype=jnp.float32)
                       * -(math.log(10000.0) / dim))                                 # [dim//2]
    angles = position * div_term[None, :]                                            # [max_len, dim//2]
    pe = jnp.zeros((max_len, dim), jnp.float32)
    pe = pe.at[:, 0::2].set(jnp.sin(angles))
    pe = pe.at[:, 1::2].set(jnp.cos(angles))
    return pe.astype(dtype)


# --------------------------------------- kernel -----------------------------------------

def _pe_add_kernel(emb_ref, pe_ref, out_ref, *, scale):
    # Works for all the BlockSpec layouts used below via jnp broadcasting:
    #   (1, TL, D) emb + (TL, D) pe          (full-seq, lane-aligned D)
    #   (1, TL, D) emb + (1, D) pe           (step path, single PE row)
    #   (B,  TC)   emb + (1, TC) pe          (flattened lane-dense path for small D)
    x = emb_ref[...].astype(jnp.float32) * scale + pe_ref[...].astype(jnp.float32)
    out_ref[...] = x.astype(out_ref.dtype)


# ----------------------------------- pallas wrappers ------------------------------------

def _compiler_params(n_parallel_axes, block_bytes):
    vmem_limit = int(min(32 * _MIB, max(16 * _MIB, 6 * block_bytes)))
    return pltpu.CompilerParams(
        dimension_semantics=("parallel",) * n_parallel_axes,
        vmem_limit_bytes=vmem_limit,
    )


def _pe_add_rows(emb, pe_rows, scale, target_block_bytes):
    """Lane-aligned d_model (D % 128 == 0).  emb: [B, L, D]; pe_rows: [L, D] or [1, D]."""
    B, L, D = emb.shape
    itemsize = emb.dtype.itemsize

    # Row-tile sized by bytes (~roofline knee), multiple of 8 sublanes or the full extent.
    tl = target_block_bytes // (D * itemsize)
    TL = L if tl >= L else min(L, max(_SUBLANE, (tl // _SUBLANE) * _SUBLANE))

    # L tiles leading (v7x core split even for tiny B); batch innermost so the PE block index
    # is constant across b and Pallas skips the redundant PE DMA.
    grid = (pl.cdiv(L, TL), B)

    pe_is_row = pe_rows.shape[0] == 1  # step path: single row, always block 0
    pe_spec = (pl.BlockSpec((1, D), lambda l, b: (0, 0)) if pe_is_row
               else pl.BlockSpec((TL, D), lambda l, b: (l, 0)))

    block_bytes = TL * D * itemsize
    cost = pl.CostEstimate(
        flops=2 * B * L * D,
        transcendentals=0,
        bytes_accessed=(2 * B * L + pe_rows.shape[0]) * D * itemsize,
    )

    return pl.pallas_call(
        functools.partial(_pe_add_kernel, scale=scale),
        grid=grid,
        in_specs=[
            pl.BlockSpec((1, TL, D), lambda l, b: (b, l, 0)),   # emb tile
            pe_spec,                                            # PE (batch-invariant / constant)
        ],
        out_specs=pl.BlockSpec((1, TL, D), lambda l, b: (b, l, 0)),
        out_shape=jax.ShapeDtypeStruct((B, L, D), emb.dtype),
        compiler_params=_compiler_params(2, block_bytes),
        cost_estimate=cost,
    )(emb, pe_rows)


def _pe_add_flat(emb, pe_rows, scale, target_block_bytes):
    """d_model not lane-aligned (D % 128 != 0): flatten to (B, L*D) so the lane axis is a
    large multiple of 128 -> unmasked lane-dense stores.  PE is a single (1, L*D) row
    broadcast over the sublane (batch) axis inside the kernel."""
    B, L, D = emb.shape
    N = L * D
    itemsize = emb.dtype.itemsize

    emb2 = emb.reshape(B, N)            # row-major, no data movement
    pe2 = pe_rows.reshape(1, N)

    tc = target_block_bytes // (B * itemsize)
    TC = N if tc >= N else min(N, max(_LANE, (tc // _LANE) * _LANE))
    grid = (pl.cdiv(N, TC),)

    block_bytes = B * TC * itemsize
    cost = pl.CostEstimate(
        flops=2 * B * N,
        transcendentals=0,
        bytes_accessed=(2 * B + 1) * N * itemsize,
    )

    out = pl.pallas_call(
        functools.partial(_pe_add_kernel, scale=scale),
        grid=grid,
        in_specs=[
            pl.BlockSpec((B, TC), lambda c: (0, c)),   # emb columns
            pl.BlockSpec((1, TC), lambda c: (0, c)),   # PE row (read once per column tile)
        ],
        out_specs=pl.BlockSpec((B, TC), lambda c: (0, c)),
        out_shape=jax.ShapeDtypeStruct((B, N), emb.dtype),
        compiler_params=_compiler_params(1, block_bytes),
        cost_estimate=cost,
    )(emb2, pe2)
    return out.reshape(B, L, D)


# ------------------------------------ public wrapper ------------------------------------

def positional_encoding(emb, pe_table, *, step=None, target_block_bytes=2 * _MIB):
    """emb: [B, L, D]; pe_table: [max_len, D].  Returns emb * sqrt(D) + PE (dropout = identity)."""
    B, L, D = emb.shape
    scale = float(math.sqrt(D))

    # PyTorch truthiness reproduced on purpose: step == 0 / None takes the full-seq branch.
    if step:
        pe_row = pe_table[step].astype(jnp.float32).reshape(1, D)
        small = (B * L * D) * emb.dtype.itemsize <= 64 * 1024
        if small or L == 1 or D % _LANE != 0:
            # Decode fast path: one fused XLA elementwise op; no HBM-materialized broadcast,
            # no kernel-launch / per-grid-step overhead on a few-KB activation.
            return (emb.astype(jnp.float32) * scale
                    + pe_row.reshape(1, 1, D)).astype(emb.dtype)
        return _pe_add_rows(emb, pe_row, scale, target_block_bytes)

    pe_rows = pe_table[:L].astype(jnp.float32)
    if D % _LANE == 0:
        return _pe_add_rows(emb, pe_rows, scale, target_block_bytes)
    return _pe_add_flat(emb, pe_rows, scale, target_block_bytes)


# --------------------------------- pure-JAX reference -----------------------------------

def reference(emb, pe_table, step=None):
    B, L, D = emb.shape
    out = emb.astype(jnp.float32) * math.sqrt(D)
    if step:
        out = out + pe_table[step][None, None, :].astype(jnp.float32)
    else:
        out = out + pe_table[None, :L, :].astype(jnp.float32)
    return out.astype(emb.dtype)


# ----------------------------------------- main -----------------------------------------

if __name__ == "__main__":
    key = jax.random.PRNGKey(0)

    # Case 1: small d_model (lane-flattened path), full sequence.  B=2, L=8, D=32.
    B, L, D = 2, 8, 32
    pe_t = make_sinusoid_table(64, D)
    emb = jax.random.normal(key, (B, L, D), dtype=jnp.float32)
    out = jax.block_until_ready(positional_encoding(emb, pe_t))
    assert jnp.allclose(out, reference(emb, pe_t), rtol=1e-5, atol=1e-5), "mismatch (flat path)"

    # Case 1b: flattened path with multiple column tiles + a partial last tile.
    B2, L2, D2 = 2, 10, 32
    pe_t2 = make_sinusoid_table(64, D2)
    emb2 = jax.random.normal(jax.random.fold_in(key, 1), (B2, L2, D2), dtype=jnp.float32)
    out2 = jax.block_until_ready(
        positional_encoding(emb2, pe_t2, target_block_bytes=1024))
    assert jnp.allclose(out2, reference(emb2, pe_t2), rtol=1e-5, atol=1e-5), \
        "mismatch (flat path, partial tile)"

    # Case 2: lane-aligned d_model (3-D path), partial L tile, PE resident across batch.
    B3, L3, D3 = 2, 20, 128
    pe_t3 = make_sinusoid_table(64, D3)
    emb3 = jax.random.normal(jax.random.fold_in(key, 2), (B3, L3, D3), dtype=jnp.float32)
    out3 = jax.block_until_ready(
        positional_encoding(emb3, pe_t3, target_block_bytes=_SUBLANE * D3 * 4))
    assert jnp.allclose(out3, reference(emb3, pe_t3), rtol=1e-5, atol=1e-5), \
        "mismatch (row path)"

    # Case 3: decode step path, tiny shape -> fused jnp fast path (semantics check).
    out_s = jax.block_until_ready(positional_encoding(emb, pe_t, step=3))
    assert jnp.allclose(out_s, reference(emb, pe_t, step=3), rtol=1e-5, atol=1e-5), \
        "mismatch (step, jnp fast path)"

    # Case 3b: step path on a larger lane-aligned shape -> Pallas kernel with the single
    # PE row broadcast in-kernel (constant index_map, fetched once).
    B4, L4, D4 = 2, 128, 256
    pe_t4 = make_sinusoid_table(256, D4)
    emb4 = jax.random.normal(jax.random.fold_in(key, 3), (B4, L4, D4), dtype=jnp.float32)
    out4 = jax.block_until_ready(positional_encoding(emb4, pe_t4, step=5))
    assert jnp.allclose(out4, reference(emb4, pe_t4, step=5), rtol=1e-5, atol=1e-5), \
        "mismatch (step, pallas row path)"

    print("KERNEL_OK")
</pallas_src>

<mosaic_0001>
module attributes {stable_mosaic.version = 11 : i64} {
  func.func @_pe_add_kernel(%arg0: i32, %arg1: memref<2x256xf32, #tpu.memory_space<vmem>>, %arg2: memref<1x256xf32, #tpu.memory_space<vmem>>, %arg3: memref<2x256xf32, #tpu.memory_space<vmem>>) attributes {dimension_semantics = [#tpu.dimension_semantics<parallel>], iteration_bounds = array<i64: 1>, scalar_prefetch = 0 : i64, scratch_operands = 0 : i64, tpu.core_type = #tpu.core_type<tc>, window_params = [{transform_indices = @transform_0, window_bounds = array<i64: 2, 256>}, {transform_indices = @transform_1, window_bounds = array<i64: 1, 256>}, {transform_indices = @transform_2, window_bounds = array<i64: 2, 256>}]} {
    %c0 = arith.constant 0 : index
    %c0_0 = arith.constant 0 : index
    %0 = vector.load %arg1[%c0, %c0_0] : memref<2x256xf32, #tpu.memory_space<vmem>>, vector<2x256xf32>
    %cst = arith.constant 5.65685415 : f32
    %1 = vector.broadcast %cst : f32 to vector<2x256xf32>
    %2 = arith.mulf %0, %1 : vector<2x256xf32>
    %c0_1 = arith.constant 0 : index
    %c0_2 = arith.constant 0 : index
    %3 = vector.load %arg2[%c0_1, %c0_2] : memref<1x256xf32, #tpu.memory_space<vmem>>, vector<1x256xf32>
    %4 = vector.broadcast %3 : vector<1x256xf32> to vector<2x256xf32>
    %5 = arith.addf %2, %4 : vector<2x256xf32>
    %c0_3 = arith.constant 0 : index
    %c0_4 = arith.constant 0 : index
    %6 = vector.load %arg3[%c0_3, %c0_4] : memref<2x256xf32, #tpu.memory_space<vmem>>, vector<2x256xf32>
    tpu.vector_store %arg3[%c0_3, %c0_4], %5 {strides = array<i32>} : memref<2x256xf32, #tpu.memory_space<vmem>>, vector<2x256xf32>,
    return
  }
  func.func @transform_0(%arg0: i32) -> (i32, i32) {
    %c0_i32 = arith.constant 0 : i32
    %c0_i32_0 = arith.constant 0 : i32
    return %c0_i32, %arg0 : i32, i32
  }
  func.func @transform_1(%arg0: i32) -> (i32, i32) {
    %c0_i32 = arith.constant 0 : i32
    %c0_i32_0 = arith.constant 0 : i32
    return %c0_i32, %arg0 : i32, i32
  }
  func.func @transform_2(%arg0: i32) -> (i32, i32) {
    %c0_i32 = arith.constant 0 : i32
    %c0_i32_0 = arith.constant 0 : i32
    return %c0_i32, %arg0 : i32, i32
  }
}

</mosaic_0001>

<llo_original>
// kernel: tpu_custom_call.1
$region0: #{tpu_custom_call.1}
  #allocation0 [shape = 'u32[]', space=smem, size = 0x4, offset = 0x4, fixed_abs, tag = 'smem constant byte address 0x4 - core index']
  #allocation1 [shape = 'u32[144,128]{1,0:T(1,128)}', space=vmem, size = 0x12000, scoped, tag = 'internal scratch']
  %s0 = inlined_call_operand.hbm [shape: f32[2,256], index: 0, kind: input, shape index: {}]
  %s1 = inlined_call_operand.vmem [shape: f32[1,256], index: 1, kind: input, shape index: {}]
  %s2 = inlined_call_operand.hbm [shape: f32[2,256], index: 2, kind: output, shape index: {}]
  %s3 = sld [smem:[#allocation0]]
  $region22: #{tpu_custom_call.1} parent=0
    _
  %s5 = ssub.s32 1, %s3
  %s6 = scalar_select 0, %s5, %s3
  $region1: #{tpu_custom_call.1} parent=0
    #allocation2 [shape = 'u8[2048]{0}', space=vmem, size = 0x800, scoped, tag = 'input window, operand 0, single buffered']
    #allocation3 [shape = 's32[1]{0}', space=sflag, size = 0x4, scoped, tag = 'scoped memory for tpu_custom_call.1']
    #allocation4 [shape = 's32[1]{0}', space=sflag, size = 0x4, scoped, tag = 'scoped memory for tpu_custom_call.1']
    #allocation5 [shape = 'u8[2048]{0}', space=vmem, size = 0x800, scoped, tag = 'output window, operand 0, single buffered']
    %7 = vsyncpa [#allocation3], 0
    %8 = vsyncpa [#allocation4], 0
    // Predicated region
    $region2: #{tpu_custom_call.1} parent=1 // pred_check
      _
    $region3: #{tpu_custom_call.1} parent=1 // pred_check_branch
      %10 = sbr.rel (0) target = $region5
    $region4: #{tpu_custom_call.1} parent=1 // pred_region
      %s12 = ssub.s32 64, 64
      %13 = vsyncadd [#allocation3], %s12
      %s15 = sshll.u32 [#allocation2], 4
      %s16 = int_to_ptr.vmem [resolvable:$true] %s15
      %18 = dma.hbm_to_vmem [thread:$0]  %s0, 64, %s16, [#allocation3]
    $region5: #{tpu_custom_call.1} parent=1 // pred_fallthru
      _
    // Predicated region
    $region6: #{tpu_custom_call.1} parent=1 // pred_check
      _
    $region7: #{tpu_custom_call.1} parent=1 // pred_check_branch
      %20 = sbr.rel (0) target = $region9
    $region8: #{tpu_custom_call.1} parent=1 // pred_region
      _
    $region9: #{tpu_custom_call.1} parent=1 // pred_fallthru
      _
    // Predicated region
    $region10: #{tpu_custom_call.1} parent=1 // pred_check
      _
    $region11: #{tpu_custom_call.1} parent=1 // pred_check_branch
      %22 = sbr.rel (0) target = $region13
    $region12: #{tpu_custom_call.1} parent=1 // pred_region
      %23 = dma.done [#allocation3], 64
    $region13: #{tpu_custom_call.1} parent=1 // pred_fallthru
      _
    %v24 = vld [vmem:[#allocation2] sm:$0xf]
    %v25 = vmul.f32 %v24, 5.656854
    %v26 = vld [vmem:[%s1] sm:$0x3]
    %v28 = vlaneseq
    %v29 = vshrl.u32 %v28, 7
    %v30 = vsub.s32 0, %v29
    %v31 = vrot.slane %v26, %v30
    %v32 = vlaneseq
    %v33 = vshrl.u32 %v32, 7
    %v34 = vsub.s32 1, %v33
    %v35 = vrot.slane %v26, %v34
    %v36 = vcombine.low %v31, %v35
    %v38 = vunpack.c.l.s4 1983009808
    %v39 = vunpack.c.0.s8 %v38
    %v40 = vlaneseq
    %v41 = vshrl.u32 %v40, 7
    %v42 = vsub.s32 %v39, %v41
    %v43 = vrot.slane %v36, %v42
    %v45 = vadd.f32 %v25, %v43
    %46 = vst [vmem:[#allocation5] sm:$0xf] %v45
    // Predicated region
    $region14: #{tpu_custom_call.1} parent=1 // pred_check
      _
    $region15: #{tpu_custom_call.1} parent=1 // pred_check_branch
      %48 = sbr.rel (0) target = $region17
    $region16: #{tpu_custom_call.1} parent=1 // pred_region
      %s50 = ssub.s32 64, 64
      %51 = vsyncadd [#allocation4], %s50
      %s53 = sshll.u32 [#allocation5], 4
      %s54 = int_to_ptr.vmem [resolvable:$true] %s53
      %56 = dma.vmem_to_hbm [thread:$0]  %s54, 64, %s2, [#allocation4]
    $region17: #{tpu_custom_call.1} parent=1 // pred_fallthru
      _
    // Predicated region
    $region18: #{tpu_custom_call.1} parent=1 // pred_check
      _
    $region19: #{tpu_custom_call.1} parent=1 // pred_check_branch
      %58 = sbr.rel (0) target = $region21
    $region20: #{tpu_custom_call.1} parent=1 // pred_region
      %59 = dma.done [#allocation4], 64
    $region21: #{tpu_custom_call.1} parent=1 // pred_fallthru
      _
    %60 = vsyncpa [#allocation3], 1
    %61 = vsyncpa [#allocation4], 1

</llo_original>
